<compile_context>
chip_gen: v5e
topology: v5e:2x2
jax: 0.10.0
libtpu: 0.0.40
codegen_flags: <defaults>
</compile_context>

<pallas_src>
import math
import jax
import jax.numpy as jnp
from jax.experimental import pallas as pl
from jax.experimental.pallas import tpu as pltpu


def _time_feature_embed_kernel(x_ref, w_ref, o_ref):
    # x_ref: (block_rows, d_inp*pack) tile of the packed input view
    # w_ref: (d_inp*pack, d_model*pack) block-diagonal expanded weight (resident)
    # o_ref: (block_rows, d_model*pack) lane-dense output tile
    o_ref[...] = jnp.dot(
        x_ref[...], w_ref[...], preferred_element_type=jnp.float32
    ).astype(o_ref.dtype)


def _round_up(x, m):
    return ((x + m - 1) // m) * m


def _choose_pack(M, d_inp, d_model):
    """Row-packing factor.

    Guarantees n_out = pack*d_model is a multiple of 128 (unmasked, lane-dense
    stores) and keeps doubling the pack (densifying the K dim too, capped at
    k_in <= 128 and n_out <= 1024) as long as it still divides M, so the
    packed view stays a pure metadata reshape (no pad copy, no output slice).
    """
    if d_model >= 128 or 128 % d_model != 0:
        return 1  # d_model already lane-dense (or does not divide 128)
    base = 128 // d_model
    best = base
    p = base
    while p * 2 * d_model <= 1024 and p * 2 * d_inp <= 128:
        p *= 2
        if M % p == 0:
            best = p
    if M % base != 0:
        # A small pad is unavoidable anyway; take the largest candidate.
        best = p
    return best


def expand_weight(weight, pack):
    """kron(I_pack, W): block-diagonal weight for the packed row-major view.

    Tiny (<= 512 KiB f32).  Hoist/cache in real use so it is not re-emitted
    every call (inside jit it constant-folds when `weight` is a constant)."""
    if pack == 1:
        return weight
    return jnp.kron(jnp.eye(pack, dtype=weight.dtype), weight)


def time_feature_embedding(x, weight, *, block_rows=None, out_dtype=None,
                           vmem_budget_bytes=12 * 1024 * 1024):
    """x: (B, L, d_inp); weight: (d_inp, d_model) -> (B, L, d_model).

    Equivalent to nn.Linear(d_inp, d_model, bias=False): y = x @ weight.
    `block_rows` (packed rows per tile) is auto-derived from `vmem_budget_bytes`
    when None.  `out_dtype` defaults to x.dtype; pass jnp.bfloat16 to halve
    output HBM traffic (f32 accumulation is kept either way).
    """
    B, L, d_inp = x.shape
    d_model = weight.shape[1]
    if out_dtype is None:
        out_dtype = x.dtype
    M = B * L

    pack = _choose_pack(M, d_inp, d_model)
    k_in = d_inp * pack
    n_out = d_model * pack

    x2d = x.reshape(M, d_inp)
    rem = M % pack
    if rem:
        # Only taken when M is not a multiple of the packing factor: pad by
        # < pack rows (jnp.pad materializes a copy, so we avoid it otherwise).
        x2d = jnp.pad(x2d, ((0, pack - rem), (0, 0)))
    M_pack = x2d.shape[0]
    Mv = M_pack // pack
    x_view = x2d.reshape(Mv, k_in)            # metadata-only reshape
    w_exp = expand_weight(weight, pack)

    # Tile size from a VMEM budget safe on all generations (v5e 16 MiB scoped
    # default, v6e 32 MiB, v7x 32 MiB scoped / 64 MiB total).  Lane widths are
    # rounded up to 128 for (8,128) VMEM-tile padding; x2 for double buffering.
    # The double-buffered weight (<= 1 MiB) fits in the remaining slack.
    in_b = jnp.dtype(x.dtype).itemsize
    out_b = jnp.dtype(out_dtype).itemsize
    per_row = 2 * (_round_up(k_in, 128) * in_b + _round_up(n_out, 128) * out_b)
    auto_rows = max(8, int(vmem_budget_bytes) // per_row)
    if block_rows is None:
        block_rows = auto_rows
    block_rows = max(8, (min(block_rows, auto_rows) // 8) * 8)
    if block_rows >= Mv:
        block_rows = Mv                       # single full-extent block
    grid = (pl.cdiv(Mv, block_rows),)         # last block may be partial (masked by Pallas)

    cost = pl.CostEstimate(
        flops=2 * M * d_inp * d_model,
        transcendentals=0,
        bytes_accessed=(M * d_inp * in_b
                        + d_inp * d_model * jnp.dtype(weight.dtype).itemsize
                        + M * d_model * out_b),
    )

    out_view = pl.pallas_call(
        _time_feature_embed_kernel,
        out_shape=jax.ShapeDtypeStruct((Mv, n_out), out_dtype),
        grid_spec=pltpu.PrefetchScalarGridSpec(
            num_scalar_prefetch=0,
            grid=grid,
            in_specs=[
                # Tiled, auto-pipelined (double-buffered) input rows.
                pl.BlockSpec((block_rows, k_in), lambda i: (i, 0)),
                # Tiny weight, resident across the grid (constant index_map).
                # Note: Pallas still double-buffers it — harmless at <= 512 KiB;
                # do not scale this spec up blindly.
                pl.BlockSpec((k_in, n_out), lambda i: (0, 0)),
            ],
            out_specs=pl.BlockSpec((block_rows, n_out), lambda i: (i, 0)),
        ),
        compiler_params=pltpu.CompilerParams(
            # Rows are independent.
            # TODO(synk): on v7x, switch to pltpu.CORE_PARALLEL (or pl.core_map
            # over create_tensorcore_mesh) if xprof shows a single busy
            # TensorCore; plain "parallel" is kept because it is safe on
            # single-core v5e/v6e.
            dimension_semantics=("parallel",),
        ),
        cost_estimate=cost,
    )(x_view, w_exp)

    y2d = out_view.reshape(M_pack, d_model)   # metadata-only reshape
    if rem:
        y2d = y2d[:M]                         # only when padding was needed
    return y2d.reshape(B, L, d_model)


if __name__ == "__main__":
    # Module config: freq='h' -> d_inp = 4
    d_inp = 4
    d_model = 32
    B, L = 2, 8

    key = jax.random.PRNGKey(0)
    kx, kw = jax.random.split(key)

    # Deterministic init mimicking nn.Linear default (kaiming-uniform-ish bound)
    bound = 1.0 / math.sqrt(d_inp)
    weight = jax.random.uniform(
        kw, (d_inp, d_model), dtype=jnp.float32, minval=-bound, maxval=bound
    )
    x = jax.random.normal(kx, (B, L, d_inp), dtype=jnp.float32)

    out = jax.block_until_ready(time_feature_embedding(x, weight))

    # Sanity check against plain-JAX reference
    ref = jnp.einsum("bli,io->blo", x, weight)
    assert out.shape == (B, L, d_model)
    assert jnp.allclose(out, ref, atol=1e-5, rtol=1e-5)

    print("KERNEL_OK")
</pallas_src>

<mosaic_0001>
module attributes {stable_mosaic.version = 11 : i64} {
  func.func @_time_feature_embed_kernel(%arg0: i32, %arg1: memref<1x64xf32, #tpu.memory_space<vmem>>, %arg2: memref<64x512xf32, #tpu.memory_space<vmem>>, %arg3: memref<1x512xf32, #tpu.memory_space<vmem>>) attributes {dimension_semantics = [#tpu.dimension_semantics<parallel>], iteration_bounds = array<i64: 1>, scalar_prefetch = 0 : i64, scratch_operands = 0 : i64, tpu.core_type = #tpu.core_type<tc>, window_params = [{transform_indices = @transform_0, window_bounds = array<i64: 1, 64>}, {pipeline_mode = #tpu.pipeline_mode<synchronous>, transform_indices = @transform_1, window_bounds = array<i64: 64, 512>}, {transform_indices = @transform_2, window_bounds = array<i64: 1, 512>}]} {
    %c0 = arith.constant 0 : index
    %c0_0 = arith.constant 0 : index
    %0 = vector.load %arg1[%c0, %c0_0] : memref<1x64xf32, #tpu.memory_space<vmem>>, vector<1x64xf32>
    %c0_1 = arith.constant 0 : index
    %c0_2 = arith.constant 0 : index
    %1 = vector.load %arg2[%c0_1, %c0_2] : memref<64x512xf32, #tpu.memory_space<vmem>>, vector<64x512xf32>
    %cst = arith.constant dense<0.000000e+00> : vector<1x512xf32>
    %2 = tpu.matmul %0, %1, %cst {dimension_numbers = #tpu.dot_dimension_numbers<[1], [0], [0], [1], [0, 0, 1, 1], [], []>} : vector<1x64xf32>, vector<64x512xf32>, vector<1x512xf32> -> vector<1x512xf32>
    %c0_3 = arith.constant 0 : index
    %c0_4 = arith.constant 0 : index
    %3 = vector.load %arg3[%c0_3, %c0_4] : memref<1x512xf32, #tpu.memory_space<vmem>>, vector<1x512xf32>
    tpu.vector_store %arg3[%c0_3, %c0_4], %2 {strides = array<i32>} : memref<1x512xf32, #tpu.memory_space<vmem>>, vector<1x512xf32>,
    return
  }
  func.func @transform_0(%arg0: i32) -> (i32, i32) {
    %c0_i32 = arith.constant 0 : i32
    %c0_i32_0 = arith.constant 0 : i32
    return %arg0, %c0_i32 : i32, i32
  }
  func.func @transform_1(%arg0: i32) -> (i32, i32) {
    %c0_i32 = arith.constant 0 : i32
    %c0_i32_0 = arith.constant 0 : i32
    %c0_i32_1 = arith.constant 0 : i32
    return %c0_i32, %c0_i32_0 : i32, i32
  }
  func.func @transform_2(%arg0: i32) -> (i32, i32) {
    %c0_i32 = arith.constant 0 : i32
    %c0_i32_0 = arith.constant 0 : i32
    return %arg0, %c0_i32 : i32, i32
  }
}

</mosaic_0001>

<llo_original>
// kernel: tpu_custom_call.1
$region0: #{tpu_custom_call.1}
  #allocation0 [shape = 'u32[]', space=smem, size = 0x4, offset = 0x4, fixed_abs, tag = 'smem constant byte address 0x4 - core index']
  #allocation1 [shape = 'u32[72,128]{1,0:T(1,128)}', space=vmem, size = 0x9000, scoped, tag = 'internal scratch']
  %s0 = inlined_call_operand.hbm [shape: f32[1,64], index: 0, kind: input, shape index: {}]
  %s1 = inlined_call_operand.hbm [shape: f32[64,512], index: 1, kind: input, shape index: {}]
  %s2 = inlined_call_operand.hbm [shape: f32[1,512], index: 2, kind: output, shape index: {}]
  %s3 = sld [smem:[#allocation0]]
  $region26: #{tpu_custom_call.1} parent=0
    _
  %s5 = ssub.s32 1, %s3
  %s6 = scalar_select 0, %s5, %s3
  $region1: #{tpu_custom_call.1} parent=0
    #allocation2 [shape = 'u8[512]{0}', space=vmem, size = 0x400, scoped, tag = 'input window, operand 0, single buffered']
    #allocation3 [shape = 's32[1]{0}', space=sflag, size = 0x4, scoped, tag = 'scoped memory for tpu_custom_call.1']
    #allocation4 [shape = 's32[1]{0}', space=sflag, size = 0x4, scoped, tag = 'scoped memory for tpu_custom_call.1']
    #allocation5 [shape = 'u8[131072]{0}', space=vmem, size = 0x20000, scoped, tag = 'input window, operand 1, single buffered']
    #allocation6 [shape = 's32[1]{0}', space=sflag, size = 0x4, scoped, tag = 'scoped memory for tpu_custom_call.1']
    #allocation7 [shape = 'u8[2048]{0}', space=vmem, size = 0x800, scoped, tag = 'output window, operand 0, single buffered']
    %7 = vsyncpa [#allocation3], 0
    %8 = vsyncpa [#allocation6], 0
    %9 = vsyncpa [#allocation4], 0
    // Predicated region
    $region2: #{tpu_custom_call.1} parent=1 // pred_check
      _
    $region3: #{tpu_custom_call.1} parent=1 // pred_check_branch
      %11 = sbr.rel (0) target = $region5
    $region4: #{tpu_custom_call.1} parent=1 // pred_region
      %13 = vsyncadd [#allocation3], 0
      %s15 = sshll.u32 %s0, 4
      %s16 = int_to_ptr.hbm [resolvable:$true] %s15
      %s17 = sshll.u32 [#allocation2], 4
      %s18 = int_to_ptr.vmem [resolvable:$true] %s17
      %20 = dma.hbm_to_vmem [thread:$0]  %s16, 16, %s18, [#allocation3]
    $region5: #{tpu_custom_call.1} parent=1 // pred_fallthru
      _
    // Predicated region
    $region6: #{tpu_custom_call.1} parent=1 // pred_check
      _
    $region7: #{tpu_custom_call.1} parent=1 // pred_check_branch
      %22 = sbr.rel (0) target = $region9
    $region8: #{tpu_custom_call.1} parent=1 // pred_region
      %24 = vsyncadd [#allocation6], 0
      %s25 = sshll.u32 %s1, 4
      %s26 = int_to_ptr.hbm [resolvable:$true] %s25
      %s27 = sshll.u32 [#allocation5], 4
      %s28 = int_to_ptr.vmem [resolvable:$true] %s27
      %33 = dma.hbm_to_vmem [thread:$0]  %s26, 4096, %s28, [#allocation6], 512, 512, 32
    $region9: #{tpu_custom_call.1} parent=1 // pred_fallthru
      _
    // Predicated region
    $region10: #{tpu_custom_call.1} parent=1 // pred_check
      _
    $region11: #{tpu_custom_call.1} parent=1 // pred_check_branch
      %35 = sbr.rel (0) target = $region13
    $region12: #{tpu_custom_call.1} parent=1 // pred_region
      %37 = dma.done [#allocation3], 16
    $region13: #{tpu_custom_call.1} parent=1 // pred_fallthru
      _
    // Predicated region
    $region14: #{tpu_custom_call.1} parent=1 // pred_check
      _
    $region15: #{tpu_custom_call.1} parent=1 // pred_check_branch
      %39 = sbr.rel (0) target = $region17
    $region16: #{tpu_custom_call.1} parent=1 // pred_region
      %41 = dma.done [#allocation6], 4096
    $region17: #{tpu_custom_call.1} parent=1 // pred_fallthru
      _
    %v42 = vld [vmem:[#allocation2] sm:$0x1]
    %v43 = vld [vmem:[#allocation5] sm:$0xff]
    %v44 = vld [vmem:[#allocation5 + $0x8] sm:$0xff]
    %v45 = vld [vmem:[#allocation5 + $0x10] sm:$0xff]
    %v46 = vld [vmem:[#allocation5 + $0x18] sm:$0xff]
    %v47 = vld [vmem:[#allocation5 + $0x20] sm:$0xff]
    %v48 = vld [vmem:[#allocation5 + $0x28] sm:$0xff]
    %v49 = vld [vmem:[#allocation5 + $0x30] sm:$0xff]
    %v50 = vld [vmem:[#allocation5 + $0x38] sm:$0xff]
    %v51 = vld [vmem:[#allocation5 + $0x40] sm:$0xff]
    %v52 = vld [vmem:[#allocation5 + $0x48] sm:$0xff]
    %v53 = vld [vmem:[#allocation5 + $0x50] sm:$0xff]
    %v54 = vld [vmem:[#allocation5 + $0x58] sm:$0xff]
    %v55 = vld [vmem:[#allocation5 + $0x60] sm:$0xff]
    %v56 = vld [vmem:[#allocation5 + $0x68] sm:$0xff]
    %v57 = vld [vmem:[#allocation5 + $0x70] sm:$0xff]
    %v58 = vld [vmem:[#allocation5 + $0x78] sm:$0xff]
    %v59 = vld [vmem:[#allocation5 + $0x80] sm:$0xff]
    %v60 = vld [vmem:[#allocation5 + $0x88] sm:$0xff]
    %v61 = vld [vmem:[#allocation5 + $0x90] sm:$0xff]
    %v62 = vld [vmem:[#allocation5 + $0x98] sm:$0xff]
    %v63 = vld [vmem:[#allocation5 + $0xa0] sm:$0xff]
    %v64 = vld [vmem:[#allocation5 + $0xa8] sm:$0xff]
    %v65 = vld [vmem:[#allocation5 + $0xb0] sm:$0xff]
    %v66 = vld [vmem:[#allocation5 + $0xb8] sm:$0xff]
    %v67 = vld [vmem:[#allocation5 + $0xc0] sm:$0xff]
    %v68 = vld [vmem:[#allocation5 + $0xc8] sm:$0xff]
    %v69 = vld [vmem:[#allocation5 + $0xd0] sm:$0xff]
    %v70 = vld [vmem:[#allocation5 + $0xd8] sm:$0xff]
    %v71 = vld [vmem:[#allocation5 + $0xe0] sm:$0xff]
    %v72 = vld [vmem:[#allocation5 + $0xe8] sm:$0xff]
    %v73 = vld [vmem:[#allocation5 + $0xf0] sm:$0xff]
    %v74 = vld [vmem:[#allocation5 + $0xf8] sm:$0xff]
    %vm75 = vcmask 523264
    %v77 = vsel %vm75, %v42, 0
    %79 = vmatpush.msra.mxu0 0.0
    %80 = vmatpush.msra.mxu0 0.0
    %81 = vmatpush.msra.mxu0 0.0
    %82 = vmatpush.msra.mxu0 0.0
    %83 = vmatpush.msra.mxu0 0.0
    %84 = vmatpush.msra.mxu0 0.0
    %85 = vmatpush.msra.mxu0 0.0
    %86 = vmatpush.msra.mxu0 0.0
    %87 = vmatpush.msra.mxu0 %v71
    %88 = vmatpush.msra.mxu0 %v67
    %89 = vmatpush.msra.mxu0 %v63
    %90 = vmatpush.msra.mxu0 %v59
    %91 = vmatpush.msra.mxu0 %v55
    %92 = vmatpush.msra.mxu0 %v51
    %93 = vmatpush.msra.mxu0 %v47
    %94 = vmatpush.msra.mxu0 %v43
    %95 = vmatmul.f32.gmra.mxu0 %v77
    %v96 = vpop.f32.mrf.mxu0
    %v97 = vadd.f32 0.0, %v96
    %98 = vdwg.mxu0
    %99 = vmatpush.msra.mxu0 0.0
    %100 = vmatpush.msra.mxu0 0.0
    %101 = vmatpush.msra.mxu0 0.0
    %102 = vmatpush.msra.mxu0 0.0
    %103 = vmatpush.msra.mxu0 0.0
    %104 = vmatpush.msra.mxu0 0.0
    %105 = vmatpush.msra.mxu0 0.0
    %106 = vmatpush.msra.mxu0 0.0
    %107 = vmatpush.msra.mxu0 %v72
    %108 = vmatpush.msra.mxu0 %v68
    %109 = vmatpush.msra.mxu0 %v64
    %110 = vmatpush.msra.mxu0 %v60
    %111 = vmatpush.msra.mxu0 %v56
    %112 = vmatpush.msra.mxu0 %v52
    %113 = vmatpush.msra.mxu0 %v48
    %114 = vmatpush.msra.mxu0 %v44
    %115 = vmatmul.f32.gmra.mxu0 %v77
    %v116 = vpop.f32.mrf.mxu0
    %v117 = vadd.f32 0.0, %v116
    %118 = vdwg.mxu0
    %119 = vmatpush.msra.mxu0 0.0
    %120 = vmatpush.msra.mxu0 0.0
    %121 = vmatpush.msra.mxu0 0.0
    %122 = vmatpush.msra.mxu0 0.0
    %123 = vmatpush.msra.mxu0 0.0
    %124 = vmatpush.msra.mxu0 0.0
    %125 = vmatpush.msra.mxu0 0.0
    %126 = vmatpush.msra.mxu0 0.0
    %127 = vmatpush.msra.mxu0 %v73
    %128 = vmatpush.msra.mxu0 %v69
    %129 = vmatpush.msra.mxu0 %v65
    %130 = vmatpush.msra.mxu0 %v61
    %131 = vmatpush.msra.mxu0 %v57
    %132 = vmatpush.msra.mxu0 %v53
    %133 = vmatpush.msra.mxu0 %v49
    %134 = vmatpush.msra.mxu0 %v45
    %135 = vmatmul.f32.gmra.mxu0 %v77
    %v136 = vpop.f32.mrf.mxu0
    %v137 = vadd.f32 0.0, %v136
    %138 = vdwg.mxu0
    %139 = vmatpush.msra.mxu0 0.0
    %140 = vmatpush.msra.mxu0 0.0
    %141 = vmatpush.msra.mxu0 0.0
    %142 = vmatpush.msra.mxu0 0.0
    %143 = vmatpush.msra.mxu0 0.0
    %144 = vmatpush.msra.mxu0 0.0
    %145 = vmatpush.msra.mxu0 0.0
    %146 = vmatpush.msra.mxu0 0.0
    %147 = vmatpush.msra.mxu0 %v74
    %148 = vmatpush.msra.mxu0 %v70
    %149 = vmatpush.msra.mxu0 %v66
    %150 = vmatpush.msra.mxu0 %v62
    %151 = vmatpush.msra.mxu0 %v58
    %152 = vmatpush.msra.mxu0 %v54
    %153 = vmatpush.msra.mxu0 %v50
    %154 = vmatpush.msra.mxu0 %v46
    %155 = vmatmul.f32.gmra.mxu0 %v77
    %v156 = vpop.f32.mrf.mxu0
    %v157 = vadd.f32 0.0, %v156
    %158 = vdwg.mxu0
    %v163 = vrot.slane %v117, 7
    %v164 = vrot.slane %v137, 6
    %v165 = vrot.slane %v157, 5
    %vm166 = vcmask 1040384
    %v167 = vsel %vm166, %v97, %v163
    %vm168 = vcmask 1042434
    %v169 = vsel %vm168, %v164, %v165
    %vm170 = vcmask 1041408
    %v171 = vsel %vm170, %v167, %v169
    %v173 = vlaneseq
    %vm174 = vcmp.ge.s32.totalorder %v173, 0
    %vm175 = vcmp.lt.s32.totalorder %v173, 512
    %vm176 = vmand %vm174, %vm175
    %177 = vst.msk [vmem:[#allocation7] sm:$0xf] %vm176, %v171
    // Predicated region
    $region18: #{tpu_custom_call.1} parent=1 // pred_check
      _
    $region19: #{tpu_custom_call.1} parent=1 // pred_check_branch
      %179 = sbr.rel (0) target = $region21
    $region20: #{tpu_custom_call.1} parent=1 // pred_region
      %181 = vsyncadd [#allocation4], 0
      %s183 = sshll.u32 [#allocation7], 4
      %s184 = int_to_ptr.vmem [resolvable:$true] %s183
      %s185 = sshll.u32 %s2, 4
      %s186 = int_to_ptr.hbm [resolvable:$true] %s185
      %188 = dma.vmem_to_hbm [thread:$0]  %s184, 64, %s186, [#allocation4]
    $region21: #{tpu_custom_call.1} parent=1 // pred_fallthru
      _
    // Predicated region
    $region22: #{tpu_custom_call.1} parent=1 // pred_check
      _
    $region23: #{tpu_custom_call.1} parent=1 // pred_check_branch
      %190 = sbr.rel (0) target = $region25
    $region24: #{tpu_custom_call.1} parent=1 // pred_region
      %192 = dma.done [#allocation4], 64
    $region25: #{tpu_custom_call.1} parent=1 // pred_fallthru
      _
    %193 = vsyncpa [#allocation3], 1
    %194 = vsyncpa [#allocation6], 1
    %195 = vsyncpa [#allocation4], 1

</llo_original>
